<compile_context>
chip_gen: v7x
topology: tpu7x:2x2x1
jax: 0.10.0
libtpu: 0.0.40
codegen_flags: <defaults>
</compile_context>

<pallas_src>
import math

import numpy as np
import jax
import jax.numpy as jnp
from jax.experimental import pallas as pl
from jax.experimental.pallas import tpu as pltpu


def _lse_latent_kernel(scale_ref, z_ref, et_ref, o_ref):
    """One grid step: Gb groups x one codebook-column tile.

    scale_ref : (1,)          SMEM  alpha / T  (group-invariant scalar)
    z_ref     : (Gb, M, D)    VMEM  latent group batch (input dtype, zero padded)
    et_ref    : (D, Mt)       VMEM  codebook^T column tile, pre-scaled by -2*alpha/T
    o_ref     : (1,1,8,128)   VMEM  per-(step, tile) partial sum, splat to one vreg
    """
    Gb, M, D = z_ref.shape
    Mt = et_ref.shape[-1]
    scale = scale_ref[0]

    # (Gb, M, D) -> (Gb*M, D): collapsing leading dims is layout-free when M % 8 == 0
    # (typical codebook sizes); otherwise Mosaic inserts a relayout copy (still correct).
    z = z_ref[...].reshape(Gb * M, D)

    # s'[i, j] = (alpha/T) * (||z_i||^2 - 2 z_i . e_j); the -2*alpha/T factor is folded
    # into e^T in the wrapper, the (alpha/T)*||e_j||^2 piece is re-attached outside.
    zdote = jnp.dot(z, et_ref[...], preferred_element_type=jnp.float32)   # (R, Mt) MXU
    zf = z.astype(jnp.float32)
    zz = jnp.sum(zf * zf, axis=1, keepdims=True) * scale                  # (R, 1)
    s = (zdote + zz).reshape(Gb, M, Mt)                                   # (grp,row,code)

    # Per-group logsumexp over the M rows, per codebook column.  Kept in f32 on all
    # generations (bf16 exp would ~2x EUP throughput on v6e/v7x at a precision cost).
    m = jnp.max(s, axis=1, keepdims=True)                                 # (Gb, 1, Mt)
    lse = m + jnp.log(jnp.sum(jnp.exp(s - m), axis=1, keepdims=True))     # (Gb, 1, Mt)

    # Reduce to one scalar per grid step (cross-lane reduce rides the XLU slot) and
    # write a full lane-dense vreg so the store is an unmasked vst even when M < 128.
    total = jnp.sum(lse)
    o_ref[...] = jnp.zeros((1, 1, 8, 128), jnp.float32) + total


def _round_up(x, m):
    return -(-x // m) * m


def _vmem_capacity_bytes():
    try:
        return int(pltpu.get_tpu_info().vmem_capacity_bytes)
    except Exception:
        return 64 * 1024 * 1024   # conservative fallback == v7x per-TC VMEM


def _plan_tiles(G, M, D, itemsize, vmem_cap):
    """Pick (groups per step, codebook-column tile) from bytes moved, not row counts."""
    r8 = lambda v: _round_up(max(int(v), 1), 8)
    r128 = lambda v: _round_up(max(int(v), 1), 128)

    # Codebook-column tile: bounds the f32 score temporaries for large M without
    # shrinking the group batch (column tiles are independent in the LSE).
    Mt = M
    if M > 2048:
        for cand in range(2048, 255, -256):
            if M % cand == 0:
                Mt = cand
                break

    # Generation-aware budget for resident blocks + temporaries (~1/3 of VMEM).
    temp_budget = vmem_cap // 3

    # Per-step z block should move a few MiB of HBM to amortize the ~0.35us grid-step
    # overhead (bytes-based sizing).
    z_group_bytes = M * D * itemsize
    gb_target = max(1, (4 * 1024 * 1024) // max(z_group_bytes, 1))

    # Conservative per-group VMEM cost, (8,128)-tile rounded:
    #   double-buffered z block (input dtype) + f32 score/exp temps + f32 z copy.
    per_group = (2 * r8(M) * r128(D) * itemsize
                 + 4 * r8(M) * (3 * r128(Mt) + r128(D)))
    fixed = 2 * r8(D) * r128(Mt) * itemsize + 2 * 8 * 128 * 4   # e_t tile + out blocks
    gb_vmem = max(1, (temp_budget - fixed) // max(per_group, 1))

    Gb = int(max(1, min(gb_target, gb_vmem, G)))
    if G >= 2:
        # Keep >= 2 grid steps so both v7x TensorCores get work under "parallel";
        # one extra step costs ~0.35us on single-TC parts.
        Gb = min(Gb, -(-G // 2))
    return Gb, Mt


def latent_lse_loss(z_nchw, e, log_sigma, *, latent_temp=1.0, perm_key=None):
    """JAX/Pallas equivalent of Latent.forward; returns data['lse_loss']."""
    T = float(latent_temp)
    B, C, H, W = z_nchw.shape
    D = C
    z = jnp.transpose(z_nchw, (0, 2, 3, 1)).reshape(-1, D)          # (N, D)
    N = z.shape[0]
    M = int(e.shape[0])
    G = int(np.ceil(N / M))

    vmem_cap = _vmem_capacity_bytes()
    itemsize = jnp.dtype(z.dtype).itemsize
    Gb, Mt = _plan_tiles(G, M, D, itemsize, vmem_cap)
    num_steps = -(-G // Gb)
    G_pad = num_steps * Gb
    num_jt = M // Mt
    pad_rows = G_pad * M - N

    if perm_key is not None:
        # torch.randperm equivalent; fuse F.pad into the gather (tail indices hit an
        # appended zero row) -> z hits HBM once instead of gather + pad.
        perm = jax.random.permutation(perm_key, N)
        if pad_rows:
            idx = jnp.concatenate([perm, jnp.full((pad_rows,), N, dtype=perm.dtype)])
            z = jnp.concatenate([z, jnp.zeros((1, D), z.dtype)], axis=0)[idx]
        else:
            z = z[perm]
    elif pad_rows:
        z = jnp.pad(z, ((0, pad_rows), (0, 0)))
    z = z.reshape(G_pad, M, D)

    # Group-invariant scalars, hoisted out of the kernel.
    ls = log_sigma.reshape(()).astype(jnp.float32)
    alpha = -0.5 * jnp.exp(-2.0 * ls)                               # -1/(2*sigma^2)
    scale = (alpha / T).reshape(1).astype(jnp.float32)              # kernel SMEM scalar
    e32 = e.astype(jnp.float32)
    e_norm_mean = jnp.sum(e32 * e32) / M                            # mean_j ||e_j||^2
    # Fold -2*alpha/T into the (small) codebook once; kernel LHS stays unscaled and
    # feeds the MXU in its native dtype.
    e_t = ((-2.0 * alpha / T) * jnp.transpose(e32)).astype(z.dtype)  # (D, M)

    out = pl.pallas_call(
        _lse_latent_kernel,
        out_shape=jax.ShapeDtypeStruct((num_steps, num_jt, 8, 128), jnp.float32),
        grid_spec=pltpu.PrefetchScalarGridSpec(
            num_scalar_prefetch=0,
            grid=(num_steps, num_jt),
            in_specs=[
                pl.BlockSpec(memory_space=pltpu.MemorySpace.SMEM),    # alpha/T (1,)
                pl.BlockSpec((Gb, M, D), lambda s, j: (s, 0, 0)),     # z group batch
                pl.BlockSpec((D, Mt), lambda s, j: (0, j)),           # scaled e^T tile
            ],
            out_specs=pl.BlockSpec((1, 1, 8, 128), lambda s, j: (s, j, 0, 0)),
        ),
        compiler_params=pltpu.CompilerParams(
            # Steps are independent (megacore on v7x); column tiles stay sequential so
            # the z block buffer is reused across them without re-DMA.
            dimension_semantics=("parallel", "arbitrary"),
            vmem_limit_bytes=int(vmem_cap * 5 // 8),                 # gen-aware scoped VMEM
        ),
    )(scale, z, e_t)

    # Re-attach hoisted constants.  Fully padded tail groups (z == 0) contribute exactly
    # log(M) per codebook column, so subtract that closed form instead of masking
    # in-kernel.  mean_{g<G,j}(T*LSE_full) = alpha*mean_j||e_j||^2 + T*sum(lse')/(G*M).
    lse_sum = jnp.sum(out[:, :, 0, 0])
    if G_pad > G:
        lse_sum = lse_sum - jnp.float32((G_pad - G) * M) * jnp.log(jnp.float32(M))
    loss = -(alpha * e_norm_mean + (T * lse_sum) / (G * M))
    loss = loss + 0.5 * D * (2.0 * ls - 1.0) + math.log(M)           # log(e) == 1
    return loss


def _reference_loss(z_nchw, e, log_sigma, latent_temp, perm_key):
    """Pure-JAX reference mirroring the PyTorch module line-by-line."""
    T = latent_temp
    B, C, H, W = z_nchw.shape
    D = C
    z = jnp.transpose(z_nchw, (0, 2, 3, 1)).reshape(-1, D)
    N = z.shape[0]
    if perm_key is not None:
        z = z[jax.random.permutation(perm_key, N)]
    M = e.shape[0]
    G = int(np.ceil(N / M))
    z = jnp.pad(z, ((0, G * M - N), (0, 0))).reshape(G, M, D)
    dist = jnp.sum((z[:, :, None, :] - e[None, None, :, :]) ** 2, axis=3)
    alpha = -1.0 / (2.0 * jnp.exp(log_sigma) ** 2)
    loss = -jnp.mean(T * jax.nn.logsumexp(alpha * dist / T, axis=1), axis=1)
    loss = loss + 0.5 * D * (2.0 * log_sigma - np.log(np.e)) + np.log(M)
    return jnp.mean(loss)


if __name__ == "__main__":
    key = jax.random.PRNGKey(0)
    kz, ke, kperm, kz2, ke2 = jax.random.split(key, 5)

    # Case 1: z (2, 4, 16, 16) NCHW -> 512 latent vectors, codebook M=8 (exact fit).
    B, C, H, W, M = 2, 4, 16, 16, 8
    z = jax.random.normal(kz, (B, C, H, W), dtype=jnp.float32)
    e = jax.random.normal(ke, (M, C), dtype=jnp.float32)
    log_sigma = jnp.zeros((1,), dtype=jnp.float32)        # init_log_sigma = 0.0

    loss = latent_lse_loss(z, e, log_sigma, latent_temp=1.0, perm_key=kperm)
    jax.block_until_ready(loss)
    ref = _reference_loss(z, e, log_sigma[0], 1.0, kperm)
    np.testing.assert_allclose(np.asarray(loss), np.asarray(ref), rtol=1e-4, atol=1e-4)

    # Case 2: N=162, M=8 -> G=21 (odd) exercises row padding inside the last true group
    # and the fully-padded tail-group correction (G_pad=22), plus T != 1.
    z2 = jax.random.normal(kz2, (2, 4, 9, 9), dtype=jnp.float32)
    e2 = jax.random.normal(ke2, (M, 4), dtype=jnp.float32)
    loss2 = latent_lse_loss(z2, e2, log_sigma, latent_temp=0.7, perm_key=kperm)
    jax.block_until_ready(loss2)
    ref2 = _reference_loss(z2, e2, log_sigma[0], 0.7, kperm)
    np.testing.assert_allclose(np.asarray(loss2), np.asarray(ref2), rtol=1e-4, atol=1e-4)

    print("KERNEL_OK")
</pallas_src>

<mosaic_0001>
module attributes {stable_mosaic.version = 11 : i64} {
  func.func @_lse_latent_kernel(%arg0: i32, %arg1: i32, %arg2: memref<1xf32, #tpu.memory_space<smem>>, %arg3: memref<32x8x4xf32, #tpu.memory_space<vmem>>, %arg4: memref<4x8xf32, #tpu.memory_space<vmem>>, %arg5: memref<1x1x8x128xf32, #tpu.memory_space<vmem>>) attributes {dimension_semantics = [#tpu.dimension_semantics<parallel>, #tpu.dimension_semantics<arbitrary>], iteration_bounds = array<i64: 2, 1>, scalar_prefetch = 0 : i64, scratch_operands = 0 : i64, tpu.core_type = #tpu.core_type<tc>, window_params = [{transform_indices = @transform_0, window_bounds = array<i64: 1>}, {transform_indices = @transform_1, window_bounds = array<i64: 32, 8, 4>}, {transform_indices = @transform_2, window_bounds = array<i64: 4, 8>}, {transform_indices = @transform_3, window_bounds = array<i64: 1, 1, 8, 128>}]} {
    %c0 = arith.constant 0 : index
    %0 = memref.load %arg2[%c0] : memref<1xf32, #tpu.memory_space<smem>>
    %c0_0 = arith.constant 0 : index
    %c0_1 = arith.constant 0 : index
    %c0_2 = arith.constant 0 : index
    %1 = vector.load %arg3[%c0_0, %c0_1, %c0_2] : memref<32x8x4xf32, #tpu.memory_space<vmem>>, vector<32x8x4xf32>
    %2 = vector.shape_cast %1 : vector<32x8x4xf32> to vector<256x4xf32>
    %c0_3 = arith.constant 0 : index
    %c0_4 = arith.constant 0 : index
    %3 = vector.load %arg4[%c0_3, %c0_4] : memref<4x8xf32, #tpu.memory_space<vmem>>, vector<4x8xf32>
    %cst = arith.constant dense<0.000000e+00> : vector<256x8xf32>
    %4 = tpu.matmul %2, %3, %cst {dimension_numbers = #tpu.dot_dimension_numbers<[1], [0], [0], [1], [0, 0, 1, 1], [], []>} : vector<256x4xf32>, vector<4x8xf32>, vector<256x8xf32> -> vector<256x8xf32>
    %5 = arith.mulf %2, %2 : vector<256x4xf32>
    %cst_5 = arith.constant dense<0.000000e+00> : vector<256xf32>
    %6 = vector.multi_reduction <add>, %5, %cst_5 [1] : vector<256x4xf32> to vector<256xf32>
    %7 = vector.shape_cast %6 : vector<256xf32> to vector<256x1xf32>
    %8 = vector.broadcast %0 : f32 to vector<256x1xf32>
    %9 = arith.mulf %7, %8 : vector<256x1xf32>
    %10 = vector.broadcast %9 : vector<256x1xf32> to vector<256x8xf32>
    %11 = arith.addf %4, %10 : vector<256x8xf32>
    %12 = vector.shape_cast %11 : vector<256x8xf32> to vector<32x8x8xf32>
    %cst_6 = arith.constant dense<0xFF800000> : vector<32x8xf32>
    %13 = vector.multi_reduction <maximumf>, %12, %cst_6 [1] : vector<32x8x8xf32> to vector<32x8xf32>
    %14 = vector.shape_cast %13 : vector<32x8xf32> to vector<32x1x8xf32>
    %15 = vector.broadcast %14 : vector<32x1x8xf32> to vector<32x8x8xf32>
    %16 = arith.subf %12, %15 : vector<32x8x8xf32>
    %17 = math.exp %16 : vector<32x8x8xf32>
    %cst_7 = arith.constant dense<0.000000e+00> : vector<32x8xf32>
    %18 = vector.multi_reduction <add>, %17, %cst_7 [1] : vector<32x8x8xf32> to vector<32x8xf32>
    %19 = vector.shape_cast %18 : vector<32x8xf32> to vector<32x1x8xf32>
    %20 = math.log %19 : vector<32x1x8xf32>
    %21 = arith.addf %14, %20 : vector<32x1x8xf32>
    %22 = vector.shape_cast %21 : vector<32x1x8xf32> to vector<1x32x1x8xf32>
    %cst_8 = arith.constant dense<0.000000e+00> : vector<1xf32>
    %23 = vector.multi_reduction <add>, %22, %cst_8 [1, 2, 3] : vector<1x32x1x8xf32> to vector<1xf32>
    %24 = vector.shape_cast %23 : vector<1xf32> to vector<1x1x1x1xf32>
    %25 = vector.extract %24[0, 0, 0, 0] : f32 from vector<1x1x1x1xf32>
    %cst_9 = arith.constant 0.000000e+00 : f32
    %26 = vector.broadcast %cst_9 : f32 to vector<1x1x8x128xf32>
    %27 = vector.broadcast %25 : f32 to vector<1x1x8x128xf32>
    %28 = arith.addf %26, %27 : vector<1x1x8x128xf32>
    %c0_10 = arith.constant 0 : index
    %c0_11 = arith.constant 0 : index
    %c0_12 = arith.constant 0 : index
    %c0_13 = arith.constant 0 : index
    %29 = vector.load %arg5[%c0_10, %c0_11, %c0_12, %c0_13] : memref<1x1x8x128xf32, #tpu.memory_space<vmem>>, vector<1x1x8x128xf32>
    tpu.vector_store %arg5[%c0_10, %c0_11, %c0_12, %c0_13], %28 {strides = array<i32>} : memref<1x1x8x128xf32, #tpu.memory_space<vmem>>, vector<1x1x8x128xf32>,
    return
  }
  func.func @transform_0(%arg0: i32, %arg1: i32) -> i32 {
    %c0_i32 = arith.constant 0 : i32
    %c0_i32_0 = arith.constant 0 : i32
    return %c0_i32 : i32
  }
  func.func @transform_1(%arg0: i32, %arg1: i32) -> (i32, i32, i32) {
    %c0_i32 = arith.constant 0 : i32
    %c0_i32_0 = arith.constant 0 : i32
    %c0_i32_1 = arith.constant 0 : i32
    return %arg0, %c0_i32, %c0_i32_0 : i32, i32, i32
  }
  func.func @transform_2(%arg0: i32, %arg1: i32) -> (i32, i32) {
    %c0_i32 = arith.constant 0 : i32
    %c0_i32_0 = arith.constant 0 : i32
    return %c0_i32, %arg1 : i32, i32
  }
  func.func @transform_3(%arg0: i32, %arg1: i32) -> (i32, i32, i32, i32) {
    %c0_i32 = arith.constant 0 : i32
    %c0_i32_0 = arith.constant 0 : i32
    %c0_i32_1 = arith.constant 0 : i32
    return %arg0, %arg1, %c0_i32, %c0_i32_0 : i32, i32, i32, i32
  }
}

</mosaic_0001>

<llo_original>
// kernel: tpu_custom_call.1
$region0: #{tpu_custom_call.1}
  #allocation0 [shape = 'u32[]', space=smem, size = 0x4, offset = 0x4, fixed_abs, tag = 'smem constant byte address 0x4 - core index']
  #allocation1 [shape = 'u32[144,128]{1,0:T(1,128)}', space=vmem, size = 0x12000, scoped, tag = 'internal scratch']
  #allocation2 [shape = 'f32[1]{0:T(128)S(6)}', space=smem, size = 0x200, scoped, tag = 'scoped memory for tpu_custom_call.1']
  %s0 = inlined_call_operand.<no memory space> [shape: f32[1], index: 0, kind: input, shape index: {}]
  %s1 = inlined_call_operand.vmem [shape: f32[64,8,4], index: 1, kind: input, shape index: {}]
  %s2 = inlined_call_operand.vmem [shape: f32[4,8], index: 2, kind: input, shape index: {}]
  %s3 = inlined_call_operand.hbm [shape: f32[2,1,8,128], index: 3, kind: output, shape index: {}]
  %s4 = sld [smem:[#allocation0]]
  $region45: #{tpu_custom_call.1} parent=0
    _
  %s6 = ssub.s32 1, %s4
  %s7 = scalar_select 0, %s6, %s4
  %8 = sst [smem:[#allocation2]] %s0
  $region1: #{tpu_custom_call.1} parent=0
    #allocation3 [shape = 'u8[8192]{0}', space=vmem, size = 0x2000, scoped, tag = 'output window, operand 0']
    #allocation4 [shape = 's32[2]{0}', space=sflag, size = 0x8, scoped, tag = 'scoped memory for tpu_custom_call.1']
    %9 = vsyncpa [#allocation4], 0
    %s10 = scalar_lea.sflag [#allocation4], 1
    %11 = vsyncpa %s10, 0
    loop: start=0, step=1, limit=4
    $region2: #{tpu_custom_call.1} parent=1 // loop_pre_header
      _
    $region3: #{tpu_custom_call.1} parent=1 // loop_header
      %s13 = sphi 0, %s17
      %p14 = scmp.ge.s32.totalorder %s13, 4
      %s20 = sphi 0, %s32
      %s21 = sphi 0, %s28
      %s22 = sphi 0, %s20
      %s23 = sphi 0, %s21
      %s24 = sphi 0, %s22
      %s25 = sphi 0, %s23
      %s33 = sphi 0, %s33
      %s35 = sphi 0, %s33
      %s36 = sphi 0, %s35
      %s50 = sphi 0, %s36
      %s56 = sphi 0, %s58
      %s59 = sphi 0, %s56
      %s60 = sphi 0, %s59
      %s76 = sphi 0, %s60
      %s82 = sphi 0, %s84
      %s85 = sphi 0, %s82
      %s86 = sphi 0, %s85
      %s102 = sphi 0, %s86
      %s110 = sphi 0, %s112
      %s113 = sphi 0, %s110
      %s114 = sphi 0, %s113
      %s130 = sphi 0, %s114
    $region4: #{tpu_custom_call.1} parent=1 // loop_header_branch
      %16 = sbr.rel (%p14) target = $region8
    $region5: #{tpu_custom_call.1} parent=1 // loop_body
      %s18 = ssub.s32 %s13, 1
      %s19 = ssub.s32 %s13, 2
      %s26 = sadd.s32 1, %s21
      %p27 = scmp.ge.s32.totalorder %s26, 1
      %s28 = scalar_select %p27, 0, %s26
      %s29 = sadd.s32 1, %s20
      %s30 = scalar_select %p27, %s29, %s20
      %p31 = scmp.ge.s32.totalorder %s30, 2
      %s32 = scalar_select %p31, 0, %s30
      %s34 = sadd.s32 %s33, 1
      %p37 = scmp.eq.s32.totalorder %s13, 1
      %p38 = scmp.ne.s32.totalorder %s33, %s35
      %p39 = scmp.eq.s32.totalorder %s13, 0
      %p40 = por %p38, %p39
      %p41 = scmp.ne.s32.totalorder %s33, %s35
      %p42 = scmp.eq.s32.totalorder %s18, 1
      %p43 = por %p41, %p42
      %p44 = scmp.ne.s32.totalorder %s35, %s36
      %p45 = scmp.eq.s32.totalorder %s18, 0
      %p46 = por %p44, %p45
      %p47 = scmp.ne.s32.totalorder %s35, %s36
      %p48 = scmp.eq.s32.totalorder %s19, 1
      %p49 = por %p47, %p48
      %p51 = scmp.ne.s32.totalorder %s36, %s50
      %p52 = scmp.eq.s32.totalorder %s19, 0
      %p53 = por %p51, %p52
      %s54 = ssub.s32 %s20, %s32
      %p55 = scmp.eq.s32.totalorder %s54, 0
      %s57 = sadd.s32 %s56, 1
      %s58 = scalar_select %p55, %s56, %s57
      %p61 = pneg %p55
      %p62 = scmp.eq.s32.totalorder %s13, 1
      %p63 = por %p61, %p62
      %p64 = scmp.ne.s32.totalorder %s56, %s59
      %p65 = scmp.eq.s32.totalorder %s13, 0
      %p66 = por %p64, %p65
      %p67 = scmp.ne.s32.totalorder %s56, %s59
      %p68 = scmp.eq.s32.totalorder %s18, 1
      %p69 = por %p67, %p68
      %p70 = scmp.ne.s32.totalorder %s59, %s60
      %p71 = scmp.eq.s32.totalorder %s18, 0
      %p72 = por %p70, %p71
      %p73 = scmp.ne.s32.totalorder %s59, %s60
      %p74 = scmp.eq.s32.totalorder %s19, 1
      %p75 = por %p73, %p74
      %p77 = scmp.ne.s32.totalorder %s60, %s76
      %p78 = scmp.eq.s32.totalorder %s19, 0
      %p79 = por %p77, %p78
      %s80 = ssub.s32 %s21, %s28
      %p81 = scmp.eq.s32.totalorder %s80, 0
      %s83 = sadd.s32 %s82, 1
      %s84 = scalar_select %p81, %s82, %s83
      %p87 = pneg %p81
      %p88 = scmp.eq.s32.totalorder %s13, 1
      %p89 = por %p87, %p88
      %p90 = scmp.ne.s32.totalorder %s82, %s85
      %p91 = scmp.eq.s32.totalorder %s13, 0
      %p92 = por %p90, %p91
      %p93 = scmp.ne.s32.totalorder %s82, %s85
      %p94 = scmp.eq.s32.totalorder %s18, 1
      %p95 = por %p93, %p94
      %p96 = scmp.ne.s32.totalorder %s85, %s86
      %p97 = scmp.eq.s32.totalorder %s18, 0
      %p98 = por %p96, %p97
      %p99 = scmp.ne.s32.totalorder %s85, %s86
      %p100 = scmp.eq.s32.totalorder %s19, 1
      %p101 = por %p99, %p100
      %p103 = scmp.ne.s32.totalorder %s86, %s102
      %p104 = scmp.eq.s32.totalorder %s19, 0
      %p105 = por %p103, %p104
      %s106 = ssub.s32 %s20, %s32
      %s107 = ssub.s32 %s21, %s28
      %s108 = sor.u32 %s106, %s107
      %p109 = scmp.eq.s32.totalorder %s108, 0
      %s111 = sadd.s32 %s110, 1
      %s112 = scalar_select %p109, %s110, %s111
      %p115 = pneg %p109
      %p116 = scmp.eq.s32.totalorder %s13, 1
      %p117 = por %p115, %p116
      %p118 = scmp.ne.s32.totalorder %s110, %s113
      %p119 = scmp.eq.s32.totalorder %s13, 0
      %p120 = por %p118, %p119
      %p121 = scmp.ne.s32.totalorder %s110, %s113
      %p122 = scmp.eq.s32.totalorder %s18, 1
      %p123 = por %p121, %p122
      %p124 = scmp.ne.s32.totalorder %s113, %s114
      %p125 = scmp.eq.s32.totalorder %s18, 0
      %p126 = por %p124, %p125
      %p127 = scmp.ne.s32.totalorder %s113, %s114
      %p128 = scmp.eq.s32.totalorder %s19, 1
      %p129 = por %p127, %p128
      %p131 = scmp.ne.s32.totalorder %s114, %s130
      %p132 = scmp.eq.s32.totalorder %s19, 0
      %p133 = por %p131, %p132
      %p134 = scmp.le.s32.totalorder 1, %s13
      %p135 = scmp.lt.s32.totalorder %s13, 3
      %p136 = pnand %p134, %p135
      %p137 = pneg %p136
      // Predicated region
      $region9: #{tpu_custom_call.1} parent=5 // pred_check
        _
      $region10: #{tpu_custom_call.1} parent=5 // pred_check_branch
        %139 = sbr.rel (%p136) target = $region12
      $region11: #{tpu_custom_call.1} parent=5 // pred_region
        %s140 = ssub.s32 %s13, 1
        // Predicated region
        $region13: #{tpu_custom_call.1} parent=11 // pred_check
          %p141 = pneg %p46
        $region14: #{tpu_custom_call.1} parent=11 // pred_check_branch
          %143 = sbr.rel (%p141) target = $region16
        $region15: #{tpu_custom_call.1} parent=11 // pred_region
          _
        $region16: #{tpu_custom_call.1} parent=11 // pred_fallthru
          _
        // Predicated region
        $region17: #{tpu_custom_call.1} parent=11 // pred_check
          %p144 = pneg %p98
        $region18: #{tpu_custom_call.1} parent=11 // pred_check_branch
          %146 = sbr.rel (%p144) target = $region20
        $region19: #{tpu_custom_call.1} parent=11 // pred_region
          %p147 = scmp.lt.s32.totalorder %s23, 0
          %s148 = scalar_select %p147, %s23, 0
          %s149 = smul.addr %s148, 4
          %s150 = scalar_lea.vmem %s2, %s149
        $region20: #{tpu_custom_call.1} parent=11 // pred_fallthru
          _
      $region12: #{tpu_custom_call.1} parent=5 // pred_fallthru
        _
      %p151 = scmp.lt.s32.totalorder %s13, 2
      // Predicated region
      $region21: #{tpu_custom_call.1} parent=5 // pred_check
        %p152 = pneg %p151
      $region22: #{tpu_custom_call.1} parent=5 // pred_check_branch
        %154 = sbr.rel (%p152) target = $region24
      $region23: #{tpu_custom_call.1} parent=5 // pred_region
        // Predicated region
        $region25: #{tpu_custom_call.1} parent=23 // pred_check
          %p155 = pneg %p66
        $region26: #{tpu_custom_call.1} parent=23 // pred_check_branch
          %157 = sbr.rel (%p155) target = $region28
        $region27: #{tpu_custom_call.1} parent=23 // pred_region
          %s158 = smul.u32 32, %s20
          %p159 = scmp.lt.s32.totalorder %s158, 63
          %s160 = scalar_select %p159, %s158, 63
          %s161 = smul.addr %s160, 8
          %s162 = scalar_lea.vmem %s1, %s161
          %s163 = smul.u32 32, %s20
        $region28: #{tpu_custom_call.1} parent=23 // pred_fallthru
          _
      $region24: #{tpu_custom_call.1} parent=5 // pred_fallthru
        _
      %p164 = scmp.le.s32.totalorder 1, %s13
      %p165 = scmp.lt.s32.totalorder %s13, 3
      %p166 = pnand %p164, %p165
      %p167 = pneg %p166
      // Predicated region
      $region29: #{tpu_custom_call.1} parent=5 // pred_check
        _
      $region30: #{tpu_custom_call.1} parent=5 // pred_check_branch
        %169 = sbr.rel (%p166) target = $region32
      $region31: #{tpu_custom_call.1} parent=5 // pred_region
        %s170 = ssub.s32 %s13, 1
        %p171 = pneg %p46
        %p172 = pneg %p43
        %s173 = smul.u32 32, %s22
        %p174 = scmp.lt.s32.totalorder %s173, 63
        %s175 = scalar_select %p174, %s173, 63
        %s176 = smul.addr %s175, 8
        %s177 = scalar_lea.vmem %s1, %s176
        %p178 = pneg %p72
        %p179 = pneg %p69
        %p180 = scmp.lt.s32.totalorder %s23, 0
        %s181 = scalar_select %p180, %s23, 0
        %s182 = smul.addr %s181, 4
        %s183 = scalar_lea.vmem %s2, %s182
        %p184 = pneg %p98
        %p185 = pneg %p95
        %p186 = pneg %p126
        %p187 = pneg %p123
        %s188 = sand.u32 %s113, 1
        %s189 = scalar_lea.sflag [#allocation4], %s188
        %s190 = sand.u32 %s113, 1
        %s191 = smul.addr %s190, 8
        %s192 = scalar_lea.vmem [#allocation3], %s191
        %s193 = smul.u32 32, %s22
        %p194 = scmp.lt.s32.totalorder %s193, 63
        %s195 = scalar_select %p194, %s193, 63
        %s196 = smul.addr %s195, 8
        %s197 = scalar_lea.vmem %s1, %s196
        %s198 = smul.u32 32, %s22
        %p199 = scmp.lt.s32.totalorder %s23, 0
        %s200 = scalar_select %p199, %s23, 0
        %s201 = smul.addr %s200, 4
        %s202 = scalar_lea.vmem %s2, %s201
        %s203 = sld [smem:[#allocation2]]
        %v204 = vld [vmem:[%s197] sm:$0xff]
        %v205 = vld [vmem:[%s197 + $0x8] sm:$0xff]
        %v206 = vld [vmem:[%s197 + $0x10] sm:$0xff]
        %v207 = vld [vmem:[%s197 + $0x18] sm:$0xff]
        %v208 = vld [vmem:[%s197 + $0x20] sm:$0xff]
        %v209 = vld [vmem:[%s197 + $0x28] sm:$0xff]
        %v210 = vld [vmem:[%s197 + $0x30] sm:$0xff]
        %v211 = vld [vmem:[%s197 + $0x38] sm:$0xff]
        %v212 = vld [vmem:[%s197 + $0x40] sm:$0xff]
        %v213 = vld [vmem:[%s197 + $0x48] sm:$0xff]
        %v214 = vld [vmem:[%s197 + $0x50] sm:$0xff]
        %v215 = vld [vmem:[%s197 + $0x58] sm:$0xff]
        %v216 = vld [vmem:[%s197 + $0x60] sm:$0xff]
        %v217 = vld [vmem:[%s197 + $0x68] sm:$0xff]
        %v218 = vld [vmem:[%s197 + $0x70] sm:$0xff]
        %v219 = vld [vmem:[%s197 + $0x78] sm:$0xff]
        %v220 = vld [vmem:[%s197 + $0x80] sm:$0xff]
        %v221 = vld [vmem:[%s197 + $0x88] sm:$0xff]
        %v222 = vld [vmem:[%s197 + $0x90] sm:$0xff]
        %v223 = vld [vmem:[%s197 + $0x98] sm:$0xff]
        %v224 = vld [vmem:[%s197 + $0xa0] sm:$0xff]
        %v225 = vld [vmem:[%s197 + $0xa8] sm:$0xff]
        %v226 = vld [vmem:[%s197 + $0xb0] sm:$0xff]
        %v227 = vld [vmem:[%s197 + $0xb8] sm:$0xff]
        %v228 = vld [vmem:[%s197 + $0xc0] sm:$0xff]
        %v229 = vld [vmem:[%s197 + $0xc8] sm:$0xff]
        %v230 = vld [vmem:[%s197 + $0xd0] sm:$0xff]
        %v231 = vld [vmem:[%s197 + $0xd8] sm:$0xff]
        %v232 = vld [vmem:[%s197 + $0xe0] sm:$0xff]
        %v233 = vld [vmem:[%s197 + $0xe8] sm:$0xff]
        %v234 = vld [vmem:[%s197 + $0xf0] sm:$0xff]
        %v235 = vld [vmem:[%s197 + $0xf8] sm:$0xff]
        %v236 = vld [vmem:[%s202] sm:$0xf]
        %v237 = vmul.f32 %v204, %v204
        %v238 = vmul.f32 %v205, %v205
        %v239 = vmul.f32 %v206, %v206
        %v240 = vmul.f32 %v207, %v207
        %v241 = vmul.f32 %v208, %v208
        %v242 = vmul.f32 %v209, %v209
        %v243 = vmul.f32 %v210, %v210
        %v244 = vmul.f32 %v211, %v211
        %v245 = vmul.f32 %v212, %v212
        %v246 = vmul.f32 %v213, %v213
        %v247 = vmul.f32 %v214, %v214
        %v248 = vmul.f32 %v215, %v215
        %v249 = vmul.f32 %v216, %v216
        %v250 = vmul.f32 %v217, %v217
        %v251 = vmul.f32 %v218, %v218
        %v252 = vmul.f32 %v219, %v219
        %v253 = vmul.f32 %v220, %v220
        %v254 = vmul.f32 %v221, %v221
        %v255 = vmul.f32 %v222, %v222
        %v256 = vmul.f32 %v223, %v223
        %v257 = vmul.f32 %v224, %v224
        %v258 = vmul.f32 %v225, %v225
        %v259 = vmul.f32 %v226, %v226
        %v260 = vmul.f32 %v227, %v227
        %v261 = vmul.f32 %v228, %v228
        %v262 = vmul.f32 %v229, %v229
        %v263 = vmul.f32 %v230, %v230
        %v264 = vmul.f32 %v231, %v231
        %v265 = vmul.f32 %v232, %v232
        %v266 = vmul.f32 %v233, %v233
        %v267 = vmul.f32 %v234, %v234
        %v268 = vmul.f32 %v235, %v235
        %vm269 = vcmask 31744
        %v270 = vsel %vm269, %v237, 0.0
        %271 = vadd.xlane.f32.xlu0 %v270
        %v272 = vpop.xlane.xlu0 %271
        %v273 = vsel %vm269, %v238, 0.0
        %274 = vadd.xlane.f32.xlu0 %v273
        %v275 = vpop.xlane.xlu0 %274
        %v276 = vsel %vm269, %v239, 0.0
        %277 = vadd.xlane.f32.xlu0 %v276
        %v278 = vpop.xlane.xlu0 %277
        %v279 = vsel %vm269, %v240, 0.0
        %280 = vadd.xlane.f32.xlu0 %v279
        %v281 = vpop.xlane.xlu0 %280
        %v282 = vsel %vm269, %v241, 0.0
        %283 = vadd.xlane.f32.xlu0 %v282
        %v284 = vpop.xlane.xlu0 %283
        %v285 = vsel %vm269, %v242, 0.0
        %286 = vadd.xlane.f32.xlu0 %v285
        %v287 = vpop.xlane.xlu0 %286
        %v288 = vsel %vm269, %v243, 0.0
        %289 = vadd.xlane.f32.xlu0 %v288
        %v290 = vpop.xlane.xlu0 %289
        %v291 = vsel %vm269, %v244, 0.0
        %292 = vadd.xlane.f32.xlu0 %v291
        %v293 = vpop.xlane.xlu0 %292
        %v294 = vsel %vm269, %v245, 0.0
        %295 = vadd.xlane.f32.xlu0 %v294
        %v296 = vpop.xlane.xlu0 %295
        %v297 = vsel %vm269, %v246, 0.0
        %298 = vadd.xlane.f32.xlu0 %v297
        %v299 = vpop.xlane.xlu0 %298
        %v300 = vsel %vm269, %v247, 0.0
        %301 = vadd.xlane.f32.xlu0 %v300
        %v302 = vpop.xlane.xlu0 %301
        %v303 = vsel %vm269, %v248, 0.0
        %304 = vadd.xlane.f32.xlu0 %v303
        %v305 = vpop.xlane.xlu0 %304
        %v306 = vsel %vm269, %v249, 0.0
        %307 = vadd.xlane.f32.xlu0 %v306
        %v308 = vpop.xlane.xlu0 %307
        %v309 = vsel %vm269, %v250, 0.0
        %310 = vadd.xlane.f32.xlu0 %v309
        %v311 = vpop.xlane.xlu0 %310
        %v312 = vsel %vm269, %v251, 0.0
        %313 = vadd.xlane.f32.xlu0 %v312
        %v314 = vpop.xlane.xlu0 %313
        %v315 = vsel %vm269, %v252, 0.0
        %316 = vadd.xlane.f32.xlu0 %v315
        %v317 = vpop.xlane.xlu0 %316
        %v318 = vsel %vm269, %v253, 0.0
        %319 = vadd.xlane.f32.xlu0 %v318
        %v320 = vpop.xlane.xlu0 %319
        %v321 = vsel %vm269, %v254, 0.0
        %322 = vadd.xlane.f32.xlu0 %v321
        %v323 = vpop.xlane.xlu0 %322
        %v324 = vsel %vm269, %v255, 0.0
        %325 = vadd.xlane.f32.xlu0 %v324
        %v326 = vpop.xlane.xlu0 %325
        %v327 = vsel %vm269, %v256, 0.0
        %328 = vadd.xlane.f32.xlu0 %v327
        %v329 = vpop.xlane.xlu0 %328
        %v330 = vsel %vm269, %v257, 0.0
        %331 = vadd.xlane.f32.xlu0 %v330
        %v332 = vpop.xlane.xlu0 %331
        %v333 = vsel %vm269, %v258, 0.0
        %334 = vadd.xlane.f32.xlu0 %v333
        %v335 = vpop.xlane.xlu0 %334
        %v336 = vsel %vm269, %v259, 0.0
        %337 = vadd.xlane.f32.xlu0 %v336
        %v338 = vpop.xlane.xlu0 %337
        %v339 = vsel %vm269, %v260, 0.0
        %340 = vadd.xlane.f32.xlu0 %v339
        %v341 = vpop.xlane.xlu0 %340
        %v342 = vsel %vm269, %v261, 0.0
        %343 = vadd.xlane.f32.xlu0 %v342
        %v344 = vpop.xlane.xlu0 %343
        %v345 = vsel %vm269, %v262, 0.0
        %346 = vadd.xlane.f32.xlu0 %v345
        %v347 = vpop.xlane.xlu0 %346
        %v348 = vsel %vm269, %v263, 0.0
        %349 = vadd.xlane.f32.xlu0 %v348
        %v350 = vpop.xlane.xlu0 %349
        %v351 = vsel %vm269, %v264, 0.0
        %352 = vadd.xlane.f32.xlu0 %v351
        %v353 = vpop.xlane.xlu0 %352
        %v354 = vsel %vm269, %v265, 0.0
        %355 = vadd.xlane.f32.xlu0 %v354
        %v356 = vpop.xlane.xlu0 %355
        %v357 = vsel %vm269, %v266, 0.0
        %358 = vadd.xlane.f32.xlu0 %v357
        %v359 = vpop.xlane.xlu0 %358
        %v360 = vsel %vm269, %v267, 0.0
        %361 = vadd.xlane.f32.xlu0 %v360
        %v362 = vpop.xlane.xlu0 %361
        %v363 = vsel %vm269, %v268, 0.0
        %364 = vadd.xlane.f32.xlu0 %v363
        %v365 = vpop.xlane.xlu0 %364
        %v366 = vstv %s203
        %v367 = vmul.f32 %v272, %v366
        %v368 = vmul.f32 %v275, %v366
        %v369 = vmul.f32 %v278, %v366
        %v370 = vmul.f32 %v281, %v366
        %v371 = vmul.f32 %v284, %v366
        %v372 = vmul.f32 %v287, %v366
        %v373 = vmul.f32 %v290, %v366
        %v374 = vmul.f32 %v293, %v366
        %v375 = vmul.f32 %v296, %v366
        %v376 = vmul.f32 %v299, %v366
        %v377 = vmul.f32 %v302, %v366
        %v378 = vmul.f32 %v305, %v366
        %v379 = vmul.f32 %v308, %v366
        %v380 = vmul.f32 %v311, %v366
        %v381 = vmul.f32 %v314, %v366
        %v382 = vmul.f32 %v317, %v366
        %v383 = vmul.f32 %v320, %v366
        %v384 = vmul.f32 %v323, %v366
        %v385 = vmul.f32 %v326, %v366
        %v386 = vmul.f32 %v329, %v366
        %v387 = vmul.f32 %v332, %v366
        %v388 = vmul.f32 %v335, %v366
        %v389 = vmul.f32 %v338, %v366
        %v390 = vmul.f32 %v341, %v366
        %v391 = vmul.f32 %v344, %v366
        %v392 = vmul.f32 %v347, %v366
        %v393 = vmul.f32 %v350, %v366
        %v394 = vmul.f32 %v353, %v366
        %v395 = vmul.f32 %v356, %v366
        %v396 = vmul.f32 %v359, %v366
        %v397 = vmul.f32 %v362, %v366
        %v398 = vmul.f32 %v365, %v366
        %v400 = vsel %vm269, %v204, 0
        %v403 = vsel %vm269, %v205, 0
        %v406 = vsel %vm269, %v206, 0
        %v409 = vsel %vm269, %v207, 0
        %v412 = vsel %vm269, %v208, 0
        %v415 = vsel %vm269, %v209, 0
        %v418 = vsel %vm269, %v210, 0
        %v421 = vsel %vm269, %v211, 0
        %v424 = vsel %vm269, %v212, 0
        %v427 = vsel %vm269, %v213, 0
        %v430 = vsel %vm269, %v214, 0
        %v433 = vsel %vm269, %v215, 0
        %v436 = vsel %vm269, %v216, 0
        %v439 = vsel %vm269, %v217, 0
        %v442 = vsel %vm269, %v218, 0
        %v445 = vsel %vm269, %v219, 0
        %v448 = vsel %vm269, %v220, 0
        %v451 = vsel %vm269, %v221, 0
        %v454 = vsel %vm269, %v222, 0
        %v457 = vsel %vm269, %v223, 0
        %v460 = vsel %vm269, %v224, 0
        %v463 = vsel %vm269, %v225, 0
        %v466 = vsel %vm269, %v226, 0
        %v469 = vsel %vm269, %v227, 0
        %v472 = vsel %vm269, %v228, 0
        %v475 = vsel %vm269, %v229, 0
        %v478 = vsel %vm269, %v230, 0
        %v481 = vsel %vm269, %v231, 0
        %v484 = vsel %vm269, %v232, 0
        %v487 = vsel %vm269, %v233, 0
        %v490 = vsel %vm269, %v234, 0
        %v493 = vsel %vm269, %v235, 0
        %vm495 = vcmask 1043456
        %v497 = vsel %vm495, %v236, 0
        %499 = vmatprep.subr.mxu0 0.0
        %500 = vmatpush1.msra.mxu0 %v497
        %501 = vmatprep.subr.mxu0 0.0
        %502 = vmatpush1.msra.mxu0 0.0
        %503 = vmatprep.subr.mxu0 0.0
        %504 = vmatpush1.msra.mxu0 0.0
        %505 = vmatprep.subr.mxu0 0.0
        %506 = vmatpush1.msra.mxu0 0.0
        %507 = vmatprep.subr.mxu0 0.0
        %508 = vmatpush1.msra.mxu0 0.0
        %509 = vmatprep.subr.mxu0 0.0
        %510 = vmatpush1.msra.mxu0 0.0
        %511 = vmatprep.subr.mxu0 0.0
        %512 = vmatpush1.msra.mxu0 0.0
        %513 = vmatprep.subr.mxu0 0.0
        %514 = vmatpush1.msra.mxu0 0.0
        %515 = vmatprep.subr.mxu0 0.0
        %516 = vmatpush1.msra.mxu0 0.0
        %517 = vmatprep.subr.mxu0 0.0
        %518 = vmatpush1.msra.mxu0 0.0
        %519 = vmatprep.subr.mxu0 0.0
        %520 = vmatpush1.msra.mxu0 0.0
        %521 = vmatprep.subr.mxu0 0.0
        %522 = vmatpush1.msra.mxu0 0.0
        %523 = vmatprep.subr.mxu0 0.0
        %524 = vmatpush1.msra.mxu0 0.0
        %525 = vmatprep.subr.mxu0 0.0
        %526 = vmatpush1.msra.mxu0 0.0
        %527 = vmatprep.subr.mxu0 0.0
        %528 = vmatpush1.msra.mxu0 0.0
        %529 = vmatprep.subr.mxu0 0.0
        %530 = vmatpush1.msra.mxu0 0.0
        %531 = vmatprep.subr.mxu0 0.0
        %532 = vmatpush1.msra.mxu0 0.0
        %533 = vmatprep.subr.mxu0 0.0
        %534 = vmatpush1.msra.mxu0 0.0
        %535 = vmatprep.subr.mxu0 0.0
        %536 = vmatpush1.msra.mxu0 0.0
        %537 = vmatprep.subr.mxu0 0.0
        %538 = vmatpush1.msra.mxu0 0.0
        %539 = vmatprep.subr.mxu0 0.0
        %540 = vmatpush1.msra.mxu0 0.0
        %541 = vmatprep.subr.mxu0 0.0
        %542 = vmatpush1.msra.mxu0 0.0
        %543 = vmatprep.subr.mxu0 0.0
        %544 = vmatpush1.msra.mxu0 0.0
        %545 = vmatprep.subr.mxu0 0.0
        %546 = vmatpush1.msra.mxu0 0.0
        %547 = vmatprep.subr.mxu0 0.0
        %548 = vmatpush1.msra.mxu0 0.0
        %549 = vmatprep.subr.mxu0 0.0
        %550 = vmatpush1.msra.mxu0 0.0
        %551 = vmatprep.subr.mxu0 0.0
        %552 = vmatpush1.msra.mxu0 0.0
        %553 = vmatprep.subr.mxu0 0.0
        %554 = vmatpush1.msra.mxu0 0.0
        %555 = vmatprep.subr.mxu0 0.0
        %556 = vmatpush1.msra.mxu0 0.0
        %557 = vmatprep.subr.mxu0 0.0
        %558 = vmatpush1.msra.mxu0 0.0
        %559 = vmatprep.subr.mxu0 0.0
        %560 = vmatpush1.msra.mxu0 0.0
        %561 = vmatprep.subr.mxu0 0.0
        %562 = vmatpush1.msra.mxu0 0.0
        %563 = vmatprep.mubr.f32.mxu0 0.0
        %564 = vmatmul.mubr.f32.gmra.mrb[0].mxu0 %v400
        %v565 = vpop.f32.mrb[0].mxu0
        %v566 = vadd.f32 %v367, %v565
        %v567 = vpop.f32.mrb[0].mxu0
        %568 = vmatprep.mubr.f32.mxu0 0.0
        %569 = vmatmul.mubr.f32.gmra.mrb[0].mxu0 %v403
        %v570 = vpop.f32.mrb[0].mxu0
        %v571 = vadd.f32 %v368, %v570
        %v572 = vpop.f32.mrb[0].mxu0
        %573 = vmatprep.mubr.f32.mxu0 0.0
        %574 = vmatmul.mubr.f32.gmra.mrb[0].mxu0 %v406
        %v575 = vpop.f32.mrb[0].mxu0
        %v576 = vadd.f32 %v369, %v575
        %v577 = vpop.f32.mrb[0].mxu0
        %578 = vmatprep.mubr.f32.mxu0 0.0
        %579 = vmatmul.mubr.f32.gmra.mrb[0].mxu0 %v409
        %v580 = vpop.f32.mrb[0].mxu0
        %v581 = vadd.f32 %v370, %v580
        %v582 = vpop.f32.mrb[0].mxu0
        %583 = vmatprep.mubr.f32.mxu0 0.0
        %584 = vmatmul.mubr.f32.gmra.mrb[0].mxu0 %v412
        %v585 = vpop.f32.mrb[0].mxu0
        %v586 = vadd.f32 %v371, %v585
        %v587 = vpop.f32.mrb[0].mxu0
        %588 = vmatprep.mubr.f32.mxu0 0.0
        %589 = vmatmul.mubr.f32.gmra.mrb[0].mxu0 %v415
        %v590 = vpop.f32.mrb[0].mxu0
        %v591 = vadd.f32 %v372, %v590
        %v592 = vpop.f32.mrb[0].mxu0
        %593 = vmatprep.mubr.f32.mxu0 0.0
        %594 = vmatmul.mubr.f32.gmra.mrb[0].mxu0 %v418
        %v595 = vpop.f32.mrb[0].mxu0
        %v596 = vadd.f32 %v373, %v595
        %v597 = vpop.f32.mrb[0].mxu0
        %598 = vmatprep.mubr.f32.mxu0 0.0
        %599 = vmatmul.mubr.f32.gmra.mrb[0].mxu0 %v421
        %v600 = vpop.f32.mrb[0].mxu0
        %v601 = vadd.f32 %v374, %v600
        %v602 = vpop.f32.mrb[0].mxu0
        %603 = vmatprep.mubr.f32.mxu0 0.0
        %604 = vmatmul.mubr.f32.gmra.mrb[0].mxu0 %v424
        %v605 = vpop.f32.mrb[0].mxu0
        %v606 = vadd.f32 %v375, %v605
        %v607 = vpop.f32.mrb[0].mxu0
        %608 = vmatprep.mubr.f32.mxu0 0.0
        %609 = vmatmul.mubr.f32.gmra.mrb[0].mxu0 %v427
        %v610 = vpop.f32.mrb[0].mxu0
        %v611 = vadd.f32 %v376, %v610
        %v612 = vpop.f32.mrb[0].mxu0
        %613 = vmatprep.mubr.f32.mxu0 0.0
        %614 = vmatmul.mubr.f32.gmra.mrb[0].mxu0 %v430
        %v615 = vpop.f32.mrb[0].mxu0
        %v616 = vadd.f32 %v377, %v615
        %v617 = vpop.f32.mrb[0].mxu0
        %618 = vmatprep.mubr.f32.mxu0 0.0
        %619 = vmatmul.mubr.f32.gmra.mrb[0].mxu0 %v433
        %v620 = vpop.f32.mrb[0].mxu0
        %v621 = vadd.f32 %v378, %v620
        %v622 = vpop.f32.mrb[0].mxu0
        %623 = vmatprep.mubr.f32.mxu0 0.0
        %624 = vmatmul.mubr.f32.gmra.mrb[0].mxu0 %v436
        %v625 = vpop.f32.mrb[0].mxu0
        %v626 = vadd.f32 %v379, %v625
        %v627 = vpop.f32.mrb[0].mxu0
        %628 = vmatprep.mubr.f32.mxu0 0.0
        %629 = vmatmul.mubr.f32.gmra.mrb[0].mxu0 %v439
        %v630 = vpop.f32.mrb[0].mxu0
        %v631 = vadd.f32 %v380, %v630
        %v632 = vpop.f32.mrb[0].mxu0
        %633 = vmatprep.mubr.f32.mxu0 0.0
        %634 = vmatmul.mubr.f32.gmra.mrb[0].mxu0 %v442
        %v635 = vpop.f32.mrb[0].mxu0
        %v636 = vadd.f32 %v381, %v635
        %v637 = vpop.f32.mrb[0].mxu0
        %638 = vmatprep.mubr.f32.mxu0 0.0
        %639 = vmatmul.mubr.f32.gmra.mrb[0].mxu0 %v445
        %v640 = vpop.f32.mrb[0].mxu0
        %v641 = vadd.f32 %v382, %v640
        %v642 = vpop.f32.mrb[0].mxu0
        %643 = vmatprep.mubr.f32.mxu0 0.0
        %644 = vmatmul.mubr.f32.gmra.mrb[0].mxu0 %v448
        %v645 = vpop.f32.mrb[0].mxu0
        %v646 = vadd.f32 %v383, %v645
        %v647 = vpop.f32.mrb[0].mxu0
        %648 = vmatprep.mubr.f32.mxu0 0.0
        %649 = vmatmul.mubr.f32.gmra.mrb[0].mxu0 %v451
        %v650 = vpop.f32.mrb[0].mxu0
        %v651 = vadd.f32 %v384, %v650
        %v652 = vpop.f32.mrb[0].mxu0
        %653 = vmatprep.mubr.f32.mxu0 0.0
        %654 = vmatmul.mubr.f32.gmra.mrb[0].mxu0 %v454
        %v655 = vpop.f32.mrb[0].mxu0
        %v656 = vadd.f32 %v385, %v655
        %v657 = vpop.f32.mrb[0].mxu0
        %658 = vmatprep.mubr.f32.mxu0 0.0
        %659 = vmatmul.mubr.f32.gmra.mrb[0].mxu0 %v457
        %v660 = vpop.f32.mrb[0].mxu0
        %v661 = vadd.f32 %v386, %v660
        %v662 = vpop.f32.mrb[0].mxu0
        %663 = vmatprep.mubr.f32.mxu0 0.0
        %664 = vmatmul.mubr.f32.gmra.mrb[0].mxu0 %v460
        %v665 = vpop.f32.mrb[0].mxu0
        %v666 = vadd.f32 %v387, %v665
        %v667 = vpop.f32.mrb[0].mxu0
        %668 = vmatprep.mubr.f32.mxu0 0.0
        %669 = vmatmul.mubr.f32.gmra.mrb[0].mxu0 %v463
        %v670 = vpop.f32.mrb[0].mxu0
        %v671 = vadd.f32 %v388, %v670
        %v672 = vpop.f32.mrb[0].mxu0
        %673 = vmatprep.mubr.f32.mxu0 0.0
        %674 = vmatmul.mubr.f32.gmra.mrb[0].mxu0 %v466
        %v675 = vpop.f32.mrb[0].mxu0
        %v676 = vadd.f32 %v389, %v675
        %v677 = vpop.f32.mrb[0].mxu0
        %678 = vmatprep.mubr.f32.mxu0 0.0
        %679 = vmatmul.mubr.f32.gmra.mrb[0].mxu0 %v469
        %v680 = vpop.f32.mrb[0].mxu0
        %v681 = vadd.f32 %v390, %v680
        %v682 = vpop.f32.mrb[0].mxu0
        %683 = vmatprep.mubr.f32.mxu0 0.0
        %684 = vmatmul.mubr.f32.gmra.mrb[0].mxu0 %v472
        %v685 = vpop.f32.mrb[0].mxu0
        %v686 = vadd.f32 %v391, %v685
        %v687 = vpop.f32.mrb[0].mxu0
        %688 = vmatprep.mubr.f32.mxu0 0.0
        %689 = vmatmul.mubr.f32.gmra.mrb[0].mxu0 %v475
        %v690 = vpop.f32.mrb[0].mxu0
        %v691 = vadd.f32 %v392, %v690
        %v692 = vpop.f32.mrb[0].mxu0
        %693 = vmatprep.mubr.f32.mxu0 0.0
        %694 = vmatmul.mubr.f32.gmra.mrb[0].mxu0 %v478
        %v695 = vpop.f32.mrb[0].mxu0
        %v696 = vadd.f32 %v393, %v695
        %v697 = vpop.f32.mrb[0].mxu0
        %698 = vmatprep.mubr.f32.mxu0 0.0
        %699 = vmatmul.mubr.f32.gmra.mrb[0].mxu0 %v481
        %v700 = vpop.f32.mrb[0].mxu0
        %v701 = vadd.f32 %v394, %v700
        %v702 = vpop.f32.mrb[0].mxu0
        %703 = vmatprep.mubr.f32.mxu0 0.0
        %704 = vmatmul.mubr.f32.gmra.mrb[0].mxu0 %v484
        %v705 = vpop.f32.mrb[0].mxu0
        %v706 = vadd.f32 %v395, %v705
        %v707 = vpop.f32.mrb[0].mxu0
        %708 = vmatprep.mubr.f32.mxu0 0.0
        %709 = vmatmul.mubr.f32.gmra.mrb[0].mxu0 %v487
        %v710 = vpop.f32.mrb[0].mxu0
        %v711 = vadd.f32 %v396, %v710
        %v712 = vpop.f32.mrb[0].mxu0
        %713 = vmatprep.mubr.f32.mxu0 0.0
        %714 = vmatmul.mubr.f32.gmra.mrb[0].mxu0 %v490
        %v715 = vpop.f32.mrb[0].mxu0
        %v716 = vadd.f32 %v397, %v715
        %v717 = vpop.f32.mrb[0].mxu0
        %718 = vmatprep.mubr.f32.mxu0 0.0
        %719 = vmatmul.mubr.f32.gmra.mrb[0].mxu0 %v493
        %v720 = vpop.f32.mrb[0].mxu0
        %v721 = vadd.f32 %v398, %v720
        %v722 = vpop.f32.mrb[0].mxu0
        %723 = vdwg.mxu0
        %vm724 = vcmask 64512
        %v725 = vsel %vm724, %v566, -inf
        %v726 = vrot.slane %v725, 4
        %v727 = vmax.f32 %v725, %v726
        %v728 = vrot.slane %v727, 2
        %v729 = vmax.f32 %v727, %v728
        %v730 = vrot.slane %v729, 1
        %v731 = vmax.f32 %v729, %v730
        %v732 = vsel %vm724, %v571, -inf
        %v733 = vrot.slane %v732, 4
        %v734 = vmax.f32 %v732, %v733
        %v735 = vrot.slane %v734, 2
        %v736 = vmax.f32 %v734, %v735
        %v737 = vrot.slane %v736, 1
        %v738 = vmax.f32 %v736, %v737
        %v739 = vsel %vm724, %v576, -inf
        %v740 = vrot.slane %v739, 4
        %v741 = vmax.f32 %v739, %v740
        %v742 = vrot.slane %v741, 2
        %v743 = vmax.f32 %v741, %v742
        %v744 = vrot.slane %v743, 1
        %v745 = vmax.f32 %v743, %v744
        %v746 = vsel %vm724, %v581, -inf
        %v747 = vrot.slane %v746, 4
        %v748 = vmax.f32 %v746, %v747
        %v749 = vrot.slane %v748, 2
        %v750 = vmax.f32 %v748, %v749
        %v751 = vrot.slane %v750, 1
        %v752 = vmax.f32 %v750, %v751
        %v753 = vsel %vm724, %v586, -inf
        %v754 = vrot.slane %v753, 4
        %v755 = vmax.f32 %v753, %v754
        %v756 = vrot.slane %v755, 2
        %v757 = vmax.f32 %v755, %v756
        %v758 = vrot.slane %v757, 1
        %v759 = vmax.f32 %v757, %v758
        %v760 = vsel %vm724, %v591, -inf
        %v761 = vrot.slane %v760, 4
        %v762 = vmax.f32 %v760, %v761
        %v763 = vrot.slane %v762, 2
        %v764 = vmax.f32 %v762, %v763
        %v765 = vrot.slane %v764, 1
        %v766 = vmax.f32 %v764, %v765
        %v767 = vsel %vm724, %v596, -inf
        %v768 = vrot.slane %v767, 4
        %v769 = vmax.f32 %v767, %v768
        %v770 = vrot.slane %v769, 2
        %v771 = vmax.f32 %v769, %v770
        %v772 = vrot.slane %v771, 1
        %v773 = vmax.f32 %v771, %v772
        %v774 = vsel %vm724, %v601, -inf
        %v775 = vrot.slane %v774, 4
        %v776 = vmax.f32 %v774, %v775
        %v777 = vrot.slane %v776, 2
        %v778 = vmax.f32 %v776, %v777
        %v779 = vrot.slane %v778, 1
        %v780 = vmax.f32 %v778, %v779
        %v781 = vsel %vm724, %v606, -inf
        %v782 = vrot.slane %v781, 4
        %v783 = vmax.f32 %v781, %v782
        %v784 = vrot.slane %v783, 2
        %v785 = vmax.f32 %v783, %v784
        %v786 = vrot.slane %v785, 1
        %v787 = vmax.f32 %v785, %v786
        %v788 = vsel %vm724, %v611, -inf
        %v789 = vrot.slane %v788, 4
        %v790 = vmax.f32 %v788, %v789
        %v791 = vrot.slane %v790, 2
        %v792 = vmax.f32 %v790, %v791
        %v793 = vrot.slane %v792, 1
        %v794 = vmax.f32 %v792, %v793
        %v795 = vsel %vm724, %v616, -inf
        %v796 = vrot.slane %v795, 4
        %v797 = vmax.f32 %v795, %v796
        %v798 = vrot.slane %v797, 2
        %v799 = vmax.f32 %v797, %v798
        %v800 = vrot.slane %v799, 1
        %v801 = vmax.f32 %v799, %v800
        %v802 = vsel %vm724, %v621, -inf
        %v803 = vrot.slane %v802, 4
        %v804 = vmax.f32 %v802, %v803
        %v805 = vrot.slane %v804, 2
        %v806 = vmax.f32 %v804, %v805
        %v807 = vrot.slane %v806, 1
        %v808 = vmax.f32 %v806, %v807
        %v809 = vsel %vm724, %v626, -inf
        %v810 = vrot.slane %v809, 4
        %v811 = vmax.f32 %v809, %v810
        %v812 = vrot.slane %v811, 2
        %v813 = vmax.f32 %v811, %v812
        %v814 = vrot.slane %v813, 1
        %v815 = vmax.f32 %v813, %v814
        %v816 = vsel %vm724, %v631, -inf
        %v817 = vrot.slane %v816, 4
        %v818 = vmax.f32 %v816, %v817
        %v819 = vrot.slane %v818, 2
        %v820 = vmax.f32 %v818, %v819
        %v821 = vrot.slane %v820, 1
        %v822 = vmax.f32 %v820, %v821
        %v823 = vsel %vm724, %v636, -inf
        %v824 = vrot.slane %v823, 4
        %v825 = vmax.f32 %v823, %v824
        %v826 = vrot.slane %v825, 2
        %v827 = vmax.f32 %v825, %v826
        %v828 = vrot.slane %v827, 1
        %v829 = vmax.f32 %v827, %v828
        %v830 = vsel %vm724, %v641, -inf
        %v831 = vrot.slane %v830, 4
        %v832 = vmax.f32 %v830, %v831
        %v833 = vrot.slane %v832, 2
        %v834 = vmax.f32 %v832, %v833
        %v835 = vrot.slane %v834, 1
        %v836 = vmax.f32 %v834, %v835
        %v837 = vsel %vm724, %v646, -inf
        %v838 = vrot.slane %v837, 4
        %v839 = vmax.f32 %v837, %v838
        %v840 = vrot.slane %v839, 2
        %v841 = vmax.f32 %v839, %v840
        %v842 = vrot.slane %v841, 1
        %v843 = vmax.f32 %v841, %v842
        %v844 = vsel %vm724, %v651, -inf
        %v845 = vrot.slane %v844, 4
        %v846 = vmax.f32 %v844, %v845
        %v847 = vrot.slane %v846, 2
        %v848 = vmax.f32 %v846, %v847
        %v849 = vrot.slane %v848, 1
        %v850 = vmax.f32 %v848, %v849
        %v851 = vsel %vm724, %v656, -inf
        %v852 = vrot.slane %v851, 4
        %v853 = vmax.f32 %v851, %v852
        %v854 = vrot.slane %v853, 2
        %v855 = vmax.f32 %v853, %v854
        %v856 = vrot.slane %v855, 1
        %v857 = vmax.f32 %v855, %v856
        %v858 = vsel %vm724, %v661, -inf
        %v859 = vrot.slane %v858, 4
        %v860 = vmax.f32 %v858, %v859
        %v861 = vrot.slane %v860, 2
        %v862 = vmax.f32 %v860, %v861
        %v863 = vrot.slane %v862, 1
        %v864 = vmax.f32 %v862, %v863
        %v865 = vsel %vm724, %v666, -inf
        %v866 = vrot.slane %v865, 4
        %v867 = vmax.f32 %v865, %v866
        %v868 = vrot.slane %v867, 2
        %v869 = vmax.f32 %v867, %v868
        %v870 = vrot.slane %v869, 1
        %v871 = vmax.f32 %v869, %v870
        %v872 = vsel %vm724, %v671, -inf
        %v873 = vrot.slane %v872, 4
        %v874 = vmax.f32 %v872, %v873
        %v875 = vrot.slane %v874, 2
        %v876 = vmax.f32 %v874, %v875
        %v877 = vrot.slane %v876, 1
        %v878 = vmax.f32 %v876, %v877
        %v879 = vsel %vm724, %v676, -inf
        %v880 = vrot.slane %v879, 4
        %v881 = vmax.f32 %v879, %v880
        %v882 = vrot.slane %v881, 2
        %v883 = vmax.f32 %v881, %v882
        %v884 = vrot.slane %v883, 1
        %v885 = vmax.f32 %v883, %v884
        %v886 = vsel %vm724, %v681, -inf
        %v887 = vrot.slane %v886, 4
        %v888 = vmax.f32 %v886, %v887
        %v889 = vrot.slane %v888, 2
        %v890 = vmax.f32 %v888, %v889
        %v891 = vrot.slane %v890, 1
        %v892 = vmax.f32 %v890, %v891
        %v893 = vsel %vm724, %v686, -inf
        %v894 = vrot.slane %v893, 4
        %v895 = vmax.f32 %v893, %v894
        %v896 = vrot.slane %v895, 2
        %v897 = vmax.f32 %v895, %v896
        %v898 = vrot.slane %v897, 1
        %v899 = vmax.f32 %v897, %v898
        %v900 = vsel %vm724, %v691, -inf
        %v901 = vrot.slane %v900, 4
        %v902 = vmax.f32 %v900, %v901
        %v903 = vrot.slane %v902, 2
        %v904 = vmax.f32 %v902, %v903
        %v905 = vrot.slane %v904, 1
        %v906 = vmax.f32 %v904, %v905
        %v907 = vsel %vm724, %v696, -inf
        %v908 = vrot.slane %v907, 4
        %v909 = vmax.f32 %v907, %v908
        %v910 = vrot.slane %v909, 2
        %v911 = vmax.f32 %v909, %v910
        %v912 = vrot.slane %v911, 1
        %v913 = vmax.f32 %v911, %v912
        %v914 = vsel %vm724, %v701, -inf
        %v915 = vrot.slane %v914, 4
        %v916 = vmax.f32 %v914, %v915
        %v917 = vrot.slane %v916, 2
        %v918 = vmax.f32 %v916, %v917
        %v919 = vrot.slane %v918, 1
        %v920 = vmax.f32 %v918, %v919
        %v921 = vsel %vm724, %v706, -inf
        %v922 = vrot.slane %v921, 4
        %v923 = vmax.f32 %v921, %v922
        %v924 = vrot.slane %v923, 2
        %v925 = vmax.f32 %v923, %v924
        %v926 = vrot.slane %v925, 1
        %v927 = vmax.f32 %v925, %v926
        %v928 = vsel %vm724, %v711, -inf
        %v929 = vrot.slane %v928, 4
        %v930 = vmax.f32 %v928, %v929
        %v931 = vrot.slane %v930, 2
        %v932 = vmax.f32 %v930, %v931
        %v933 = vrot.slane %v932, 1
        %v934 = vmax.f32 %v932, %v933
        %v935 = vsel %vm724, %v716, -inf
        %v936 = vrot.slane %v935, 4
        %v937 = vmax.f32 %v935, %v936
        %v938 = vrot.slane %v937, 2
        %v939 = vmax.f32 %v937, %v938
        %v940 = vrot.slane %v939, 1
        %v941 = vmax.f32 %v939, %v940
        %v942 = vsel %vm724, %v721, -inf
        %v943 = vrot.slane %v942, 4
        %v944 = vmax.f32 %v942, %v943
        %v945 = vrot.slane %v944, 2
        %v946 = vmax.f32 %v944, %v945
        %v947 = vrot.slane %v946, 1
        %v948 = vmax.f32 %v946, %v947
        %v949 = vsub.f32 %v566, %v731
        %v950 = vsub.f32 %v571, %v738
        %v951 = vsub.f32 %v576, %v745
        %v952 = vsub.f32 %v581, %v752
        %v953 = vsub.f32 %v586, %v759
        %v954 = vsub.f32 %v591, %v766
        %v955 = vsub.f32 %v596, %v773
        %v956 = vsub.f32 %v601, %v780
        %v957 = vsub.f32 %v606, %v787
        %v958 = vsub.f32 %v611, %v794
        %v959 = vsub.f32 %v616, %v801
        %v960 = vsub.f32 %v621, %v808
        %v961 = vsub.f32 %v626, %v815
        %v962 = vsub.f32 %v631, %v822
        %v963 = vsub.f32 %v636, %v829
        %v964 = vsub.f32 %v641, %v836
        %v965 = vsub.f32 %v646, %v843
        %v966 = vsub.f32 %v651, %v850
        %v967 = vsub.f32 %v656, %v857
        %v968 = vsub.f32 %v661, %v864
        %v969 = vsub.f32 %v666, %v871
        %v970 = vsub.f32 %v671, %v878
        %v971 = vsub.f32 %v676, %v885
        %v972 = vsub.f32 %v681, %v892
        %v973 = vsub.f32 %v686, %v899
        %v974 = vsub.f32 %v691, %v906
        %v975 = vsub.f32 %v696, %v913
        %v976 = vsub.f32 %v701, %v920
        %v977 = vsub.f32 %v706, %v927
        %v978 = vsub.f32 %v711, %v934
        %v979 = vsub.f32 %v716, %v941
        %v980 = vsub.f32 %v721, %v948
        %v981 = vmul.f32 %v949, 1.442695
        %v982 = vpow.pop %v981
        %v983 = vmul.f32 %v950, 1.442695
        %v984 = vpow.pop %v983
        %v985 = vmul.f32 %v951, 1.442695
        %v986 = vpow.pop %v985
        %v987 = vmul.f32 %v952, 1.442695
        %v988 = vpow.pop %v987
        %v989 = vmul.f32 %v953, 1.442695
        %v990 = vpow.pop %v989
        %v991 = vmul.f32 %v954, 1.442695
        %v992 = vpow.pop %v991
        %v993 = vmul.f32 %v955, 1.442695
        %v994 = vpow.pop %v993
        %v995 = vmul.f32 %v956, 1.442695
        %v996 = vpow.pop %v995
        %v997 = vmul.f32 %v957, 1.442695
        %v998 = vpow.pop %v997
        %v999 = vmul.f32 %v958, 1.442695
        %v1000 = vpow.pop %v999
        %v1001 = vmul.f32 %v959, 1.442695
        %v1002 = vpow.pop %v1001
        %v1003 = vmul.f32 %v960, 1.442695
        %v1004 = vpow.pop %v1003
        %v1005 = vmul.f32 %v961, 1.442695
        %v1006 = vpow.pop %v1005
        %v1007 = vmul.f32 %v962, 1.442695
        %v1008 = vpow.pop %v1007
        %v1009 = vmul.f32 %v963, 1.442695
        %v1010 = vpow.pop %v1009
        %v1011 = vmul.f32 %v964, 1.442695
        %v1012 = vpow.pop %v1011
        %v1013 = vmul.f32 %v965, 1.442695
        %v1014 = vpow.pop %v1013
        %v1015 = vmul.f32 %v966, 1.442695
        %v1016 = vpow.pop %v1015
        %v1017 = vmul.f32 %v967, 1.442695
        %v1018 = vpow.pop %v1017
        %v1019 = vmul.f32 %v968, 1.442695
        %v1020 = vpow.pop %v1019
        %v1021 = vmul.f32 %v969, 1.442695
        %v1022 = vpow.pop %v1021
        %v1023 = vmul.f32 %v970, 1.442695
        %v1024 = vpow.pop %v1023
        %v1025 = vmul.f32 %v971, 1.442695
        %v1026 = vpow.pop %v1025
        %v1027 = vmul.f32 %v972, 1.442695
        %v1028 = vpow.pop %v1027
        %v1029 = vmul.f32 %v973, 1.442695
        %v1030 = vpow.pop %v1029
        %v1031 = vmul.f32 %v974, 1.442695
        %v1032 = vpow.pop %v1031
        %v1033 = vmul.f32 %v975, 1.442695
        %v1034 = vpow.pop %v1033
        %v1035 = vmul.f32 %v976, 1.442695
        %v1036 = vpow.pop %v1035
        %v1037 = vmul.f32 %v977, 1.442695
        %v1038 = vpow.pop %v1037
        %v1039 = vmul.f32 %v978, 1.442695
        %v1040 = vpow.pop %v1039
        %v1041 = vmul.f32 %v979, 1.442695
        %v1042 = vpow.pop %v1041
        %v1043 = vmul.f32 %v980, 1.442695
        %v1044 = vpow.pop %v1043
        %v1045 = vsel %vm724, %v982, 0.0
        %v1046 = vrot.slane %v1045, 4
        %v1047 = vadd.f32 %v1045, %v1046
        %v1048 = vrot.slane %v1047, 2
        %v1049 = vadd.f32 %v1047, %v1048
        %v1050 = vrot.slane %v1049, 1
        %v1051 = vadd.f32 %v1049, %v1050
        %v1052 = vsel %vm724, %v984, 0.0
        %v1053 = vrot.slane %v1052, 4
        %v1054 = vadd.f32 %v1052, %v1053
        %v1055 = vrot.slane %v1054, 2
        %v1056 = vadd.f32 %v1054, %v1055
        %v1057 = vrot.slane %v1056, 1
        %v1058 = vadd.f32 %v1056, %v1057
        %v1059 = vsel %vm724, %v986, 0.0
        %v1060 = vrot.slane %v1059, 4
        %v1061 = vadd.f32 %v1059, %v1060
        %v1062 = vrot.slane %v1061, 2
        %v1063 = vadd.f32 %v1061, %v1062
        %v1064 = vrot.slane %v1063, 1
        %v1065 = vadd.f32 %v1063, %v1064
        %v1066 = vsel %vm724, %v988, 0.0
        %v1067 = vrot.slane %v1066, 4
        %v1068 = vadd.f32 %v1066, %v1067
        %v1069 = vrot.slane %v1068, 2
        %v1070 = vadd.f32 %v1068, %v1069
        %v1071 = vrot.slane %v1070, 1
        %v1072 = vadd.f32 %v1070, %v1071
        %v1073 = vsel %vm724, %v990, 0.0
        %v1074 = vrot.slane %v1073, 4
        %v1075 = vadd.f32 %v1073, %v1074
        %v1076 = vrot.slane %v1075, 2
        %v1077 = vadd.f32 %v1075, %v1076
        %v1078 = vrot.slane %v1077, 1
        %v1079 = vadd.f32 %v1077, %v1078
        %v1080 = vsel %vm724, %v992, 0.0
        %v1081 = vrot.slane %v1080, 4
        %v1082 = vadd.f32 %v1080, %v1081
        %v1083 = vrot.slane %v1082, 2
        %v1084 = vadd.f32 %v1082, %v1083
        %v1085 = vrot.slane %v1084, 1
        %v1086 = vadd.f32 %v1084, %v1085
        %v1087 = vsel %vm724, %v994, 0.0
        %v1088 = vrot.slane %v1087, 4
        %v1089 = vadd.f32 %v1087, %v1088
        %v1090 = vrot.slane %v1089, 2
        %v1091 = vadd.f32 %v1089, %v1090
        %v1092 = vrot.slane %v1091, 1
        %v1093 = vadd.f32 %v1091, %v1092
        %v1094 = vsel %vm724, %v996, 0.0
        %v1095 = vrot.slane %v1094, 4
        %v1096 = vadd.f32 %v1094, %v1095
        %v1097 = vrot.slane %v1096, 2
        %v1098 = vadd.f32 %v1096, %v1097
        %v1099 = vrot.slane %v1098, 1
        %v1100 = vadd.f32 %v1098, %v1099
        %v1101 = vsel %vm724, %v998, 0.0
        %v1102 = vrot.slane %v1101, 4
        %v1103 = vadd.f32 %v1101, %v1102
        %v1104 = vrot.slane %v1103, 2
        %v1105 = vadd.f32 %v1103, %v1104
        %v1106 = vrot.slane %v1105, 1
        %v1107 = vadd.f32 %v1105, %v1106
        %v1108 = vsel %vm724, %v1000, 0.0
        %v1109 = vrot.slane %v1108, 4
        %v1110 = vadd.f32 %v1108, %v1109
        %v1111 = vrot.slane %v1110, 2
        %v1112 = vadd.f32 %v1110, %v1111
        %v1113 = vrot.slane %v1112, 1
        %v1114 = vadd.f32 %v1112, %v1113
        %v1115 = vsel %vm724, %v1002, 0.0
        %v1116 = vrot.slane %v1115, 4
        %v1117 = vadd.f32 %v1115, %v1116
        %v1118 = vrot.slane %v1117, 2
        %v1119 = vadd.f32 %v1117, %v1118
        %v1120 = vrot.slane %v1119, 1
        %v1121 = vadd.f32 %v1119, %v1120
        %v1122 = vsel %vm724, %v1004, 0.0
        %v1123 = vrot.slane %v1122, 4
        %v1124 = vadd.f32 %v1122, %v1123
        %v1125 = vrot.slane %v1124, 2
        %v1126 = vadd.f32 %v1124, %v1125
        %v1127 = vrot.slane %v1126, 1
        %v1128 = vadd.f32 %v1126, %v1127
        %v1129 = vsel %vm724, %v1006, 0.0
        %v1130 = vrot.slane %v1129, 4
        %v1131 = vadd.f32 %v1129, %v1130
        %v1132 = vrot.slane %v1131, 2
        %v1133 = vadd.f32 %v1131, %v1132
        %v1134 = vrot.slane %v1133, 1
        %v1135 = vadd.f32 %v1133, %v1134
        %v1136 = vsel %vm724, %v1008, 0.0
        %v1137 = vrot.slane %v1136, 4
        %v1138 = vadd.f32 %v1136, %v1137
        %v1139 = vrot.slane %v1138, 2
        %v1140 = vadd.f32 %v1138, %v1139
        %v1141 = vrot.slane %v1140, 1
        %v1142 = vadd.f32 %v1140, %v1141
        %v1143 = vsel %vm724, %v1010, 0.0
        %v1144 = vrot.slane %v1143, 4
        %v1145 = vadd.f32 %v1143, %v1144
        %v1146 = vrot.slane %v1145, 2
        %v1147 = vadd.f32 %v1145, %v1146
        %v1148 = vrot.slane %v1147, 1
        %v1149 = vadd.f32 %v1147, %v1148
        %v1150 = vsel %vm724, %v1012, 0.0
        %v1151 = vrot.slane %v1150, 4
        %v1152 = vadd.f32 %v1150, %v1151
        %v1153 = vrot.slane %v1152, 2
        %v1154 = vadd.f32 %v1152, %v1153
        %v1155 = vrot.slane %v1154, 1
        %v1156 = vadd.f32 %v1154, %v1155
        %v1157 = vsel %vm724, %v1014, 0.0
        %v1158 = vrot.slane %v1157, 4
        %v1159 = vadd.f32 %v1157, %v1158
        %v1160 = vrot.slane %v1159, 2
        %v1161 = vadd.f32 %v1159, %v1160
        %v1162 = vrot.slane %v1161, 1
        %v1163 = vadd.f32 %v1161, %v1162
        %v1164 = vsel %vm724, %v1016, 0.0
        %v1165 = vrot.slane %v1164, 4
        %v1166 = vadd.f32 %v1164, %v1165
        %v1167 = vrot.slane %v1166, 2
        %v1168 = vadd.f32 %v1166, %v1167
        %v1169 = vrot.slane %v1168, 1
        %v1170 = vadd.f32 %v1168, %v1169
        %v1171 = vsel %vm724, %v1018, 0.0
        %v1172 = vrot.slane %v1171, 4
        %v1173 = vadd.f32 %v1171, %v1172
        %v1174 = vrot.slane %v1173, 2
        %v1175 = vadd.f32 %v1173, %v1174
        %v1176 = vrot.slane %v1175, 1
        %v1177 = vadd.f32 %v1175, %v1176
        %v1178 = vsel %vm724, %v1020, 0.0
        %v1179 = vrot.slane %v1178, 4
        %v1180 = vadd.f32 %v1178, %v1179
        %v1181 = vrot.slane %v1180, 2
        %v1182 = vadd.f32 %v1180, %v1181
        %v1183 = vrot.slane %v1182, 1
        %v1184 = vadd.f32 %v1182, %v1183
        %v1185 = vsel %vm724, %v1022, 0.0
        %v1186 = vrot.slane %v1185, 4
        %v1187 = vadd.f32 %v1185, %v1186
        %v1188 = vrot.slane %v1187, 2
        %v1189 = vadd.f32 %v1187, %v1188
        %v1190 = vrot.slane %v1189, 1
        %v1191 = vadd.f32 %v1189, %v1190
        %v1192 = vsel %vm724, %v1024, 0.0
        %v1193 = vrot.slane %v1192, 4
        %v1194 = vadd.f32 %v1192, %v1193
        %v1195 = vrot.slane %v1194, 2
        %v1196 = vadd.f32 %v1194, %v1195
        %v1197 = vrot.slane %v1196, 1
        %v1198 = vadd.f32 %v1196, %v1197
        %v1199 = vsel %vm724, %v1026, 0.0
        %v1200 = vrot.slane %v1199, 4
        %v1201 = vadd.f32 %v1199, %v1200
        %v1202 = vrot.slane %v1201, 2
        %v1203 = vadd.f32 %v1201, %v1202
        %v1204 = vrot.slane %v1203, 1
        %v1205 = vadd.f32 %v1203, %v1204
        %v1206 = vsel %vm724, %v1028, 0.0
        %v1207 = vrot.slane %v1206, 4
        %v1208 = vadd.f32 %v1206, %v1207
        %v1209 = vrot.slane %v1208, 2
        %v1210 = vadd.f32 %v1208, %v1209
        %v1211 = vrot.slane %v1210, 1
        %v1212 = vadd.f32 %v1210, %v1211
        %v1213 = vsel %vm724, %v1030, 0.0
        %v1214 = vrot.slane %v1213, 4
        %v1215 = vadd.f32 %v1213, %v1214
        %v1216 = vrot.slane %v1215, 2
        %v1217 = vadd.f32 %v1215, %v1216
        %v1218 = vrot.slane %v1217, 1
        %v1219 = vadd.f32 %v1217, %v1218
        %v1220 = vsel %vm724, %v1032, 0.0
        %v1221 = vrot.slane %v1220, 4
        %v1222 = vadd.f32 %v1220, %v1221
        %v1223 = vrot.slane %v1222, 2
        %v1224 = vadd.f32 %v1222, %v1223
        %v1225 = vrot.slane %v1224, 1
        %v1226 = vadd.f32 %v1224, %v1225
        %v1227 = vsel %vm724, %v1034, 0.0
        %v1228 = vrot.slane %v1227, 4
        %v1229 = vadd.f32 %v1227, %v1228
        %v1230 = vrot.slane %v1229, 2
        %v1231 = vadd.f32 %v1229, %v1230
        %v1232 = vrot.slane %v1231, 1
        %v1233 = vadd.f32 %v1231, %v1232
        %v1234 = vsel %vm724, %v1036, 0.0
        %v1235 = vrot.slane %v1234, 4
        %v1236 = vadd.f32 %v1234, %v1235
        %v1237 = vrot.slane %v1236, 2
        %v1238 = vadd.f32 %v1236, %v1237
        %v1239 = vrot.slane %v1238, 1
        %v1240 = vadd.f32 %v1238, %v1239
        %v1241 = vsel %vm724, %v1038, 0.0
        %v1242 = vrot.slane %v1241, 4
        %v1243 = vadd.f32 %v1241, %v1242
        %v1244 = vrot.slane %v1243, 2
        %v1245 = vadd.f32 %v1243, %v1244
        %v1246 = vrot.slane %v1245, 1
        %v1247 = vadd.f32 %v1245, %v1246
        %v1248 = vsel %vm724, %v1040, 0.0
        %v1249 = vrot.slane %v1248, 4
        %v1250 = vadd.f32 %v1248, %v1249
        %v1251 = vrot.slane %v1250, 2
        %v1252 = vadd.f32 %v1250, %v1251
        %v1253 = vrot.slane %v1252, 1
        %v1254 = vadd.f32 %v1252, %v1253
        %v1255 = vsel %vm724, %v1042, 0.0
        %v1256 = vrot.slane %v1255, 4
        %v1257 = vadd.f32 %v1255, %v1256
        %v1258 = vrot.slane %v1257, 2
        %v1259 = vadd.f32 %v1257, %v1258
        %v1260 = vrot.slane %v1259, 1
        %v1261 = vadd.f32 %v1259, %v1260
        %v1262 = vsel %vm724, %v1044, 0.0
        %v1263 = vrot.slane %v1262, 4
        %v1264 = vadd.f32 %v1262, %v1263
        %v1265 = vrot.slane %v1264, 2
        %v1266 = vadd.f32 %v1264, %v1265
        %v1267 = vrot.slane %v1266, 1
        %v1268 = vadd.f32 %v1266, %v1267
        %v1269 = vlog2.pop %v1051
        %v1270 = vmul.f32 %v1269, 0.6931472
        %v1271 = vlog2.pop %v1058
        %v1272 = vmul.f32 %v1271, 0.6931472
        %v1273 = vlog2.pop %v1065
        %v1274 = vmul.f32 %v1273, 0.6931472
        %v1275 = vlog2.pop %v1072
        %v1276 = vmul.f32 %v1275, 0.6931472
        %v1277 = vlog2.pop %v1079
        %v1278 = vmul.f32 %v1277, 0.6931472
        %v1279 = vlog2.pop %v1086
        %v1280 = vmul.f32 %v1279, 0.6931472
        %v1281 = vlog2.pop %v1093
        %v1282 = vmul.f32 %v1281, 0.6931472
        %v1283 = vlog2.pop %v1100
        %v1284 = vmul.f32 %v1283, 0.6931472
        %v1285 = vlog2.pop %v1107
        %v1286 = vmul.f32 %v1285, 0.6931472
        %v1287 = vlog2.pop %v1114
        %v1288 = vmul.f32 %v1287, 0.6931472
        %v1289 = vlog2.pop %v1121
        %v1290 = vmul.f32 %v1289, 0.6931472
        %v1291 = vlog2.pop %v1128
        %v1292 = vmul.f32 %v1291, 0.6931472
        %v1293 = vlog2.pop %v1135
        %v1294 = vmul.f32 %v1293, 0.6931472
        %v1295 = vlog2.pop %v1142
        %v1296 = vmul.f32 %v1295, 0.6931472
        %v1297 = vlog2.pop %v1149
        %v1298 = vmul.f32 %v1297, 0.6931472
        %v1299 = vlog2.pop %v1156
        %v1300 = vmul.f32 %v1299, 0.6931472
        %v1301 = vlog2.pop %v1163
        %v1302 = vmul.f32 %v1301, 0.6931472
        %v1303 = vlog2.pop %v1170
        %v1304 = vmul.f32 %v1303, 0.6931472
        %v1305 = vlog2.pop %v1177
        %v1306 = vmul.f32 %v1305, 0.6931472
        %v1307 = vlog2.pop %v1184
        %v1308 = vmul.f32 %v1307, 0.6931472
        %v1309 = vlog2.pop %v1191
        %v1310 = vmul.f32 %v1309, 0.6931472
        %v1311 = vlog2.pop %v1198
        %v1312 = vmul.f32 %v1311, 0.6931472
        %v1313 = vlog2.pop %v1205
        %v1314 = vmul.f32 %v1313, 0.6931472
        %v1315 = vlog2.pop %v1212
        %v1316 = vmul.f32 %v1315, 0.6931472
        %v1317 = vlog2.pop %v1219
        %v1318 = vmul.f32 %v1317, 0.6931472
        %v1319 = vlog2.pop %v1226
        %v1320 = vmul.f32 %v1319, 0.6931472
        %v1321 = vlog2.pop %v1233
        %v1322 = vmul.f32 %v1321, 0.6931472
        %v1323 = vlog2.pop %v1240
        %v1324 = vmul.f32 %v1323, 0.6931472
        %v1325 = vlog2.pop %v1247
        %v1326 = vmul.f32 %v1325, 0.6931472
        %v1327 = vlog2.pop %v1254
        %v1328 = vmul.f32 %v1327, 0.6931472
        %v1329 = vlog2.pop %v1261
        %v1330 = vmul.f32 %v1329, 0.6931472
        %v1331 = vlog2.pop %v1268
        %v1332 = vmul.f32 %v1331, 0.6931472
        %v1333 = vadd.f32 %v731, %v1270
        %v1334 = vadd.f32 %v738, %v1272
        %v1335 = vadd.f32 %v745, %v1274
        %v1336 = vadd.f32 %v752, %v1276
        %v1337 = vadd.f32 %v759, %v1278
        %v1338 = vadd.f32 %v766, %v1280
        %v1339 = vadd.f32 %v773, %v1282
        %v1340 = vadd.f32 %v780, %v1284
        %v1341 = vadd.f32 %v787, %v1286
        %v1342 = vadd.f32 %v794, %v1288
        %v1343 = vadd.f32 %v801, %v1290
        %v1344 = vadd.f32 %v808, %v1292
        %v1345 = vadd.f32 %v815, %v1294
        %v1346 = vadd.f32 %v822, %v1296
        %v1347 = vadd.f32 %v829, %v1298
        %v1348 = vadd.f32 %v836, %v1300
        %v1349 = vadd.f32 %v843, %v1302
        %v1350 = vadd.f32 %v850, %v1304
        %v1351 = vadd.f32 %v857, %v1306
        %v1352 = vadd.f32 %v864, %v1308
        %v1353 = vadd.f32 %v871, %v1310
        %v1354 = vadd.f32 %v878, %v1312
        %v1355 = vadd.f32 %v885, %v1314
        %v1356 = vadd.f32 %v892, %v1316
        %v1357 = vadd.f32 %v899, %v1318
        %v1358 = vadd.f32 %v906, %v1320
        %v1359 = vadd.f32 %v913, %v1322
        %v1360 = vadd.f32 %v920, %v1324
        %v1361 = vadd.f32 %v927, %v1326
        %v1362 = vadd.f32 %v934, %v1328
        %v1363 = vadd.f32 %v941, %v1330
        %v1364 = vadd.f32 %v948, %v1332
        %vm1365 = vcmask 57344
        %v1366 = vsel %vm1365, %v1333, 0.0
        %v1367 = vsel %vm1365, %v1334, 0.0
        %v1368 = vadd.f32 %v1366, %v1367
        %v1369 = vsel %vm1365, %v1335, 0.0
        %v1370 = vadd.f32 %v1368, %v1369
        %v1371 = vsel %vm1365, %v1336, 0.0
        %v1372 = vadd.f32 %v1370, %v1371
        %v1373 = vsel %vm1365, %v1337, 0.0
        %v1374 = vadd.f32 %v1372, %v1373
        %v1375 = vsel %vm1365, %v1338, 0.0
        %v1376 = vadd.f32 %v1374, %v1375
        %v1377 = vsel %vm1365, %v1339, 0.0
        %v1378 = vadd.f32 %v1376, %v1377
        %v1379 = vsel %vm1365, %v1340, 0.0
        %v1380 = vadd.f32 %v1378, %v1379
        %v1381 = vsel %vm1365, %v1341, 0.0
        %v1382 = vadd.f32 %v1380, %v1381
        %v1383 = vsel %vm1365, %v1342, 0.0
        %v1384 = vadd.f32 %v1382, %v1383
        %v1385 = vsel %vm1365, %v1343, 0.0
        %v1386 = vadd.f32 %v1384, %v1385
        %v1387 = vsel %vm1365, %v1344, 0.0
        %v1388 = vadd.f32 %v1386, %v1387
        %v1389 = vsel %vm1365, %v1345, 0.0
        %v1390 = vadd.f32 %v1388, %v1389
        %v1391 = vsel %vm1365, %v1346, 0.0
        %v1392 = vadd.f32 %v1390, %v1391
        %v1393 = vsel %vm1365, %v1347, 0.0
        %v1394 = vadd.f32 %v1392, %v1393
        %v1395 = vsel %vm1365, %v1348, 0.0
        %v1396 = vadd.f32 %v1394, %v1395
        %v1397 = vsel %vm1365, %v1349, 0.0
        %v1398 = vadd.f32 %v1396, %v1397
        %v1399 = vsel %vm1365, %v1350, 0.0
        %v1400 = vadd.f32 %v1398, %v1399
        %v1401 = vsel %vm1365, %v1351, 0.0
        %v1402 = vadd.f32 %v1400, %v1401
        %v1403 = vsel %vm1365, %v1352, 0.0
        %v1404 = vadd.f32 %v1402, %v1403
        %v1405 = vsel %vm1365, %v1353, 0.0
        %v1406 = vadd.f32 %v1404, %v1405
        %v1407 = vsel %vm1365, %v1354, 0.0
        %v1408 = vadd.f32 %v1406, %v1407
        %v1409 = vsel %vm1365, %v1355, 0.0
        %v1410 = vadd.f32 %v1408, %v1409
        %v1411 = vsel %vm1365, %v1356, 0.0
        %v1412 = vadd.f32 %v1410, %v1411
        %v1413 = vsel %vm1365, %v1357, 0.0
        %v1414 = vadd.f32 %v1412, %v1413
        %v1415 = vsel %vm1365, %v1358, 0.0
        %v1416 = vadd.f32 %v1414, %v1415
        %v1417 = vsel %vm1365, %v1359, 0.0
        %v1418 = vadd.f32 %v1416, %v1417
        %v1419 = vsel %vm1365, %v1360, 0.0
        %v1420 = vadd.f32 %v1418, %v1419
        %v1421 = vsel %vm1365, %v1361, 0.0
        %v1422 = vadd.f32 %v1420, %v1421
        %v1423 = vsel %vm1365, %v1362, 0.0
        %v1424 = vadd.f32 %v1422, %v1423
        %v1425 = vsel %vm1365, %v1363, 0.0
        %v1426 = vadd.f32 %v1424, %v1425
        %v1427 = vsel %vm1365, %v1364, 0.0
        %v1428 = vadd.f32 %v1426, %v1427
        %1429 = vadd.xlane.f32.xlu0 %v1428
        %v1430 = vpop.xlane.xlu0 %1429
        %v1431 = vrot.slane %v1430, 4
        %v1432 = vadd.f32 %v1430, %v1431
        %v1433 = vrot.slane %v1432, 2
        %v1434 = vadd.f32 %v1432, %v1433
        %v1435 = vrot.slane %v1434, 1
        %v1436 = vadd.f32 %v1434, %v1435
        %s1437 = vtos %v1436
        %v1438 = vstv %s1437
        %v1439 = vadd.f32 %v1438, 0.0
        %1440 = vst [vmem:[%s192] sm:$0xff] %v1439
        %s1441 = sand.u32 %s113, 1
        %s1442 = scalar_lea.sflag [#allocation4], %s1441
        %s1443 = sand.u32 %s113, 1
        %s1444 = smul.addr %s1443, 8
        %s1445 = scalar_lea.vmem [#allocation3], %s1444
        // Predicated region
        $region33: #{tpu_custom_call.1} parent=31 // pred_check
          %p1446 = pneg %p123
        $region34: #{tpu_custom_call.1} parent=31 // pred_check_branch
          %1448 = sbr.rel (%p1446) target = $region36
        $region35: #{tpu_custom_call.1} parent=31 // pred_region
          %s1450 = ssub.s32 128, 128
          %1451 = vsyncadd %s1442, %s1450
          %s1452 = sadd.s32 %s23, %s22
          %s1453 = smul.addr %s1452, 128
          %s1454 = scalar_lea.hbm %s3, %s1453
          %s1456 = sshll.u32 %s1445, 4
          %s1457 = int_to_ptr.vmem [resolvable:$true] %s1456
          %1459 = dma.vmem_to_hbm [thread:$0]  %s1457, 128, %s1454, %s1442
        $region36: #{tpu_custom_call.1} parent=31 // pred_fallthru
          _
      $region32: #{tpu_custom_call.1} parent=5 // pred_fallthru
        _
      %p1460 = scmp.le.s32.totalorder 2, %s13
      // Predicated region
      $region37: #{tpu_custom_call.1} parent=5 // pred_check
        %p1461 = pneg %p1460
      $region38: #{tpu_custom_call.1} parent=5 // pred_check_branch
        %1463 = sbr.rel (%p1461) target = $region40
      $region39: #{tpu_custom_call.1} parent=5 // pred_region
        %s1464 = ssub.s32 %s13, 2
        // Predicated region
        $region41: #{tpu_custom_call.1} parent=39 // pred_check
          %p1465 = pneg %p129
        $region42: #{tpu_custom_call.1} parent=39 // pred_check_branch
          %1467 = sbr.rel (%p1465) target = $region44
        $region43: #{tpu_custom_call.1} parent=39 // pred_region
          %s1468 = sand.u32 %s114, 1
          %s1469 = scalar_lea.sflag [#allocation4], %s1468
          %s1470 = sand.u32 %s114, 1
          %s1471 = smul.addr %s1470, 8
          %s1472 = scalar_lea.vmem [#allocation3], %s1471
          %1473 = dma.done %s1469, 128
        $region44: #{tpu_custom_call.1} parent=39 // pred_fallthru
          _
      $region40: #{tpu_custom_call.1} parent=5 // pred_fallthru
        _
    $region6: #{tpu_custom_call.1} parent=1 // loop_footer
      %s17 = sadd.s32 1, %s13
    $region7: #{tpu_custom_call.1} parent=1 // loop_footer_branch
      %12 = sbr.rel target = $region3
    $region8: #{tpu_custom_call.1} parent=1 // loop_exit
      _
    %1474 = vsyncpa [#allocation4], 1
    %s1475 = scalar_lea.sflag [#allocation4], 1
    %1476 = vsyncpa %s1475, 1

</llo_original>
